<compile_context>
chip_gen: v6e
topology: v6e:2x2x1
jax: 0.10.0
libtpu: 0.0.40
codegen_flags: <defaults>
</compile_context>

<pallas_src>
import jax
import jax.numpy as jnp
from jax.experimental import pallas as pl
from jax.experimental.pallas import tpu as pltpu

EPS = 1e-5


def _device_budgets():
    """Return (target block bytes, vmem_limit_bytes) tuned per TPU generation."""
    try:
        kind = jax.devices()[0].device_kind.lower()
    except Exception:  # pragma: no cover - defensive; fall through to conservative default
        kind = ""
    if "v5 lite" in kind or "v5e" in kind or "v5litepod" in kind:
        return 6 * 1024 * 1024, 32 * 1024 * 1024      # 128 MiB VMEM, 16 MiB default scope
    if "v6" in kind:
        return 12 * 1024 * 1024, 64 * 1024 * 1024     # 128 MiB VMEM, lots of headroom
    # v7x (64 MiB physical VMEM) and unknown devices: stay conservative.
    return 8 * 1024 * 1024, 40 * 1024 * 1024


def _pick_hw_tile(hw, max_elems, c):
    """Largest lane-dense (multiple-of-128) divisor of hw within budget, else full hw."""
    budget_lanes = max(128, max_elems // max(c, 1))
    if hw <= budget_lanes or hw % 128 != 0:
        # TODO(synk): very large non-128-multiple H*W would want a masked cdiv grid here.
        return hw
    best = 128
    t = 128
    while t <= budget_lanes:
        if hw % t == 0:
            best = t
        t += 128
    return best


def _pick_n_tile(n, max_n):
    """Largest divisor of n that is <= max_n (avoids partial blocks in the reduction)."""
    max_n = max(1, max_n)
    best = 1
    for d in range(1, min(n, max_n) + 1):
        if n % d == 0:
            best = d
    return best


def batch_norm_2d(x, gamma, beta, *, eps=EPS):
    """Training-mode BatchNorm2d: per-channel stats over (N, H, W), affine gamma/beta."""
    N, C, H, W = x.shape
    hw = H * W
    x3 = x.reshape(N, C, hw)                         # free reshape, keeps C on sublanes
    gamma2 = gamma.reshape(C, 1).astype(jnp.float32)
    beta2 = beta.reshape(C, 1).astype(jnp.float32)

    block_bytes, vmem_limit = _device_budgets()
    bytes_per_elem = max(x.dtype.itemsize, 4)        # compute is fp32
    max_elems = max(block_bytes // bytes_per_elem, C * 128)

    hw_t = _pick_hw_tile(hw, max_elems, C)
    n_t = _pick_n_tile(N, max(1, max_elems // (C * hw_t)))
    ni, nj = N // n_t, hw // hw_t
    grid = (2, ni, nj)                               # phase 0 = stats, phase 1 = normalize
    inv_count = 1.0 / float(N * hw)

    x_spec = pl.BlockSpec((n_t, C, hw_t), lambda p, i, j: (i, 0, j))
    # Output block pinned to (0,0,0) during phase 0 (i*p = j*p = 0) so no garbage block is
    # ever written back; phase 1 revisits that block first and then streams the rest.
    out_spec = pl.BlockSpec((n_t, C, hw_t), lambda p, i, j: (i * p, 0, j * p))
    cvec_spec = pl.BlockSpec((C, 1), lambda p, i, j: (0, 0))

    def bn_kernel(x_ref, g_ref, b_ref, o_ref, sum_sc, sq_sc, scale_sc, shift_sc):
        p = pl.program_id(0)
        i = pl.program_id(1)
        j = pl.program_id(2)

        # ---------------- phase 0: per-channel sum / sumsq -> scale, shift ----------------
        @pl.when(p == 0)
        def _stats_phase():
            @pl.when(jnp.logical_and(i == 0, j == 0))
            def _():
                sum_sc[...] = jnp.zeros_like(sum_sc)
                sq_sc[...] = jnp.zeros_like(sq_sc)

            x_blk = x_ref[...].astype(jnp.float32)               # (n_t, C, hw_t)
            xs = jnp.sum(x_blk, axis=0)                          # (C, hw_t) slab add (VPU)
            xs2 = jnp.sum(x_blk * x_blk, axis=0)                 # (C, hw_t)
            sum_sc[...] += jnp.sum(xs, axis=1, keepdims=True)    # (C, 1) lane reduce (XLU)
            sq_sc[...] += jnp.sum(xs2, axis=1, keepdims=True)

            @pl.when(jnp.logical_and(i == pl.num_programs(1) - 1,
                                     j == pl.num_programs(2) - 1))
            def _finalize():
                mean = sum_sc[...] * inv_count
                var = sq_sc[...] * inv_count - mean * mean       # biased var (PyTorch BN)
                rstd = jax.lax.rsqrt(var + eps)                  # EUP
                scale = g_ref[...] * rstd                        # gamma * rstd
                scale_sc[...] = scale
                shift_sc[...] = b_ref[...] - mean * scale        # beta - mean*gamma*rstd

        # ---------------- phase 1: y = x * scale + shift ----------------
        @pl.when(p == 1)
        def _norm_phase():
            x_blk = x_ref[...].astype(jnp.float32)               # (n_t, C, hw_t)
            y = x_blk * scale_sc[...][None] + shift_sc[...][None]
            o_ref[...] = y.astype(o_ref.dtype)

    out3 = pl.pallas_call(
        bn_kernel,
        out_shape=jax.ShapeDtypeStruct((N, C, hw), x.dtype),
        grid_spec=pltpu.PrefetchScalarGridSpec(
            num_scalar_prefetch=0,
            grid=grid,
            in_specs=[x_spec, cvec_spec, cvec_spec],
            out_specs=out_spec,
            scratch_shapes=[pltpu.VMEM((C, 1), jnp.float32),   # sum
                            pltpu.VMEM((C, 1), jnp.float32),   # sumsq
                            pltpu.VMEM((C, 1), jnp.float32),   # scale
                            pltpu.VMEM((C, 1), jnp.float32)]), # shift
        compiler_params=pltpu.CompilerParams(
            # Scratch accumulators + phase ordering require strictly sequential execution.
            dimension_semantics=("arbitrary", "arbitrary", "arbitrary"),
            vmem_limit_bytes=vmem_limit),
    )(x3, gamma2, beta2)

    return out3.reshape(N, C, H, W)


def batch_norm_2d_ref(x, gamma, beta, eps=EPS):
    xf = x.astype(jnp.float32)
    mean = jnp.mean(xf, axis=(0, 2, 3), keepdims=True)
    var = jnp.mean((xf - mean) ** 2, axis=(0, 2, 3), keepdims=True)
    g = gamma.reshape(1, -1, 1, 1).astype(jnp.float32)
    b = beta.reshape(1, -1, 1, 1).astype(jnp.float32)
    return ((xf - mean) * jax.lax.rsqrt(var + eps) * g + b).astype(x.dtype)


if __name__ == "__main__":
    key = jax.random.PRNGKey(0)
    # BatchNorm2d(8): N=2, C=8, H=W=16
    x = jax.random.normal(key, (2, 8, 16, 16), dtype=jnp.float32)
    gamma = jnp.ones((8,), jnp.float32)    # PyTorch default weight init
    beta = jnp.zeros((8,), jnp.float32)    # PyTorch default bias init

    out = jax.block_until_ready(batch_norm_2d(x, gamma, beta))

    ref = batch_norm_2d_ref(x, gamma, beta)
    assert out.shape == (2, 8, 16, 16)
    assert jnp.allclose(out, ref, atol=1e-4, rtol=1e-4), "mismatch vs reference"
    print("KERNEL_OK")
</pallas_src>

<mosaic_0001>
module attributes {stable_mosaic.version = 11 : i64} {
  func.func @bn_kernel(%arg0: i32, %arg1: i32, %arg2: i32, %arg3: memref<2x8x256xf32, #tpu.memory_space<vmem>>, %arg4: memref<8x1xf32, #tpu.memory_space<vmem>>, %arg5: memref<8x1xf32, #tpu.memory_space<vmem>>, %arg6: memref<2x8x256xf32, #tpu.memory_space<vmem>>, %arg7: memref<8x1xf32, #tpu.memory_space<vmem>>, %arg8: memref<8x1xf32, #tpu.memory_space<vmem>>, %arg9: memref<8x1xf32, #tpu.memory_space<vmem>>, %arg10: memref<8x1xf32, #tpu.memory_space<vmem>>) attributes {dimension_semantics = [#tpu.dimension_semantics<arbitrary>, #tpu.dimension_semantics<arbitrary>, #tpu.dimension_semantics<arbitrary>], iteration_bounds = array<i64: 2, 1, 1>, scalar_prefetch = 0 : i64, scratch_operands = 4 : i64, tpu.core_type = #tpu.core_type<tc>, window_params = [{transform_indices = @transform_0, window_bounds = array<i64: 2, 8, 256>}, {pipeline_mode = #tpu.pipeline_mode<synchronous>, transform_indices = @transform_1, window_bounds = array<i64: 8, 1>}, {pipeline_mode = #tpu.pipeline_mode<synchronous>, transform_indices = @transform_2, window_bounds = array<i64: 8, 1>}, {transform_indices = @transform_3, window_bounds = array<i64: 2, 8, 256>}]} {
    %c0_i32 = arith.constant 0 : i32
    %0 = arith.cmpi eq, %arg0, %c0_i32 : i32
    %1 = arith.extui %0 : i1 to i32
    %c0_i32_0 = arith.constant 0 : i32
    %2 = arith.cmpi ne, %1, %c0_i32_0 : i32
    scf.if %2 {
      %c0_i32_2 = arith.constant 0 : i32
      %6 = arith.cmpi eq, %arg1, %c0_i32_2 : i32
      %c0_i32_3 = arith.constant 0 : i32
      %7 = arith.cmpi eq, %arg2, %c0_i32_3 : i32
      %8 = arith.andi %6, %7 : i1
      %9 = arith.extui %8 : i1 to i32
      %c0_i32_4 = arith.constant 0 : i32
      %10 = arith.cmpi ne, %9, %c0_i32_4 : i32
      scf.if %10 {
        %cst_21 = arith.constant 0.000000e+00 : f32
        %30 = vector.broadcast %cst_21 : f32 to vector<8x1xf32>
        %c0_22 = arith.constant 0 : index
        %c0_23 = arith.constant 0 : index
        %31 = vector.load %arg7[%c0_22, %c0_23] : memref<8x1xf32, #tpu.memory_space<vmem>>, vector<8x1xf32>
        tpu.vector_store %arg7[%c0_22, %c0_23], %30 {strides = array<i32>} : memref<8x1xf32, #tpu.memory_space<vmem>>, vector<8x1xf32>,
        %cst_24 = arith.constant 0.000000e+00 : f32
        %32 = vector.broadcast %cst_24 : f32 to vector<8x1xf32>
        %c0_25 = arith.constant 0 : index
        %c0_26 = arith.constant 0 : index
        %33 = vector.load %arg8[%c0_25, %c0_26] : memref<8x1xf32, #tpu.memory_space<vmem>>, vector<8x1xf32>
        tpu.vector_store %arg8[%c0_25, %c0_26], %32 {strides = array<i32>} : memref<8x1xf32, #tpu.memory_space<vmem>>, vector<8x1xf32>,
      } else {
      }
      %c0 = arith.constant 0 : index
      %c0_5 = arith.constant 0 : index
      %c0_6 = arith.constant 0 : index
      %11 = vector.load %arg3[%c0, %c0_5, %c0_6] : memref<2x8x256xf32, #tpu.memory_space<vmem>>, vector<2x8x256xf32>
      %cst = arith.constant dense<0.000000e+00> : vector<8x256xf32>
      %12 = vector.multi_reduction <add>, %11, %cst [0] : vector<2x8x256xf32> to vector<8x256xf32>
      %13 = arith.mulf %11, %11 : vector<2x8x256xf32>
      %cst_7 = arith.constant dense<0.000000e+00> : vector<8x256xf32>
      %14 = vector.multi_reduction <add>, %13, %cst_7 [0] : vector<2x8x256xf32> to vector<8x256xf32>
      %c0_8 = arith.constant 0 : index
      %c0_9 = arith.constant 0 : index
      %15 = vector.load %arg7[%c0_8, %c0_9] : memref<8x1xf32, #tpu.memory_space<vmem>>, vector<8x1xf32>
      %cst_10 = arith.constant dense<0.000000e+00> : vector<8xf32>
      %16 = vector.multi_reduction <add>, %12, %cst_10 [1] : vector<8x256xf32> to vector<8xf32>
      %17 = vector.shape_cast %16 : vector<8xf32> to vector<8x1xf32>
      %18 = arith.addf %15, %17 : vector<8x1xf32>
      %c0_11 = arith.constant 0 : index
      %c0_12 = arith.constant 0 : index
      %19 = vector.load %arg7[%c0_11, %c0_12] : memref<8x1xf32, #tpu.memory_space<vmem>>, vector<8x1xf32>
      tpu.vector_store %arg7[%c0_11, %c0_12], %18 {strides = array<i32>} : memref<8x1xf32, #tpu.memory_space<vmem>>, vector<8x1xf32>,
      %c0_13 = arith.constant 0 : index
      %c0_14 = arith.constant 0 : index
      %20 = vector.load %arg8[%c0_13, %c0_14] : memref<8x1xf32, #tpu.memory_space<vmem>>, vector<8x1xf32>
      %cst_15 = arith.constant dense<0.000000e+00> : vector<8xf32>
      %21 = vector.multi_reduction <add>, %14, %cst_15 [1] : vector<8x256xf32> to vector<8xf32>
      %22 = vector.shape_cast %21 : vector<8xf32> to vector<8x1xf32>
      %23 = arith.addf %20, %22 : vector<8x1xf32>
      %c0_16 = arith.constant 0 : index
      %c0_17 = arith.constant 0 : index
      %24 = vector.load %arg8[%c0_16, %c0_17] : memref<8x1xf32, #tpu.memory_space<vmem>>, vector<8x1xf32>
      tpu.vector_store %arg8[%c0_16, %c0_17], %23 {strides = array<i32>} : memref<8x1xf32, #tpu.memory_space<vmem>>, vector<8x1xf32>,
      %c0_i32_18 = arith.constant 0 : i32
      %25 = arith.cmpi eq, %arg1, %c0_i32_18 : i32
      %c0_i32_19 = arith.constant 0 : i32
      %26 = arith.cmpi eq, %arg2, %c0_i32_19 : i32
      %27 = arith.andi %25, %26 : i1
      %28 = arith.extui %27 : i1 to i32
      %c0_i32_20 = arith.constant 0 : i32
      %29 = arith.cmpi ne, %28, %c0_i32_20 : i32
      scf.if %29 {
        %c0_21 = arith.constant 0 : index
        %c0_22 = arith.constant 0 : index
        %30 = vector.load %arg7[%c0_21, %c0_22] : memref<8x1xf32, #tpu.memory_space<vmem>>, vector<8x1xf32>
        %cst_23 = arith.constant 0.001953125 : f32
        %31 = vector.broadcast %cst_23 : f32 to vector<8x1xf32>
        %32 = arith.mulf %30, %31 : vector<8x1xf32>
        %c0_24 = arith.constant 0 : index
        %c0_25 = arith.constant 0 : index
        %33 = vector.load %arg8[%c0_24, %c0_25] : memref<8x1xf32, #tpu.memory_space<vmem>>, vector<8x1xf32>
        %cst_26 = arith.constant 0.001953125 : f32
        %34 = vector.broadcast %cst_26 : f32 to vector<8x1xf32>
        %35 = arith.mulf %33, %34 : vector<8x1xf32>
        %36 = arith.mulf %32, %32 : vector<8x1xf32>
        %37 = arith.subf %35, %36 : vector<8x1xf32>
        %cst_27 = arith.constant 9.99999974E-6 : f32
        %38 = vector.broadcast %cst_27 : f32 to vector<8x1xf32>
        %39 = arith.addf %37, %38 : vector<8x1xf32>
        %40 = math.rsqrt %39 : vector<8x1xf32>
        %c0_28 = arith.constant 0 : index
        %c0_29 = arith.constant 0 : index
        %41 = vector.load %arg4[%c0_28, %c0_29] : memref<8x1xf32, #tpu.memory_space<vmem>>, vector<8x1xf32>
        %42 = arith.mulf %41, %40 : vector<8x1xf32>
        %c0_30 = arith.constant 0 : index
        %c0_31 = arith.constant 0 : index
        %43 = vector.load %arg9[%c0_30, %c0_31] : memref<8x1xf32, #tpu.memory_space<vmem>>, vector<8x1xf32>
        tpu.vector_store %arg9[%c0_30, %c0_31], %42 {strides = array<i32>} : memref<8x1xf32, #tpu.memory_space<vmem>>, vector<8x1xf32>,
        %c0_32 = arith.constant 0 : index
        %c0_33 = arith.constant 0 : index
        %44 = vector.load %arg5[%c0_32, %c0_33] : memref<8x1xf32, #tpu.memory_space<vmem>>, vector<8x1xf32>
        %45 = arith.mulf %32, %42 : vector<8x1xf32>
        %46 = arith.subf %44, %45 : vector<8x1xf32>
        %c0_34 = arith.constant 0 : index
        %c0_35 = arith.constant 0 : index
        %47 = vector.load %arg10[%c0_34, %c0_35] : memref<8x1xf32, #tpu.memory_space<vmem>>, vector<8x1xf32>
        tpu.vector_store %arg10[%c0_34, %c0_35], %46 {strides = array<i32>} : memref<8x1xf32, #tpu.memory_space<vmem>>, vector<8x1xf32>,
      } else {
      }
    } else {
    }
    %c1_i32 = arith.constant 1 : i32
    %3 = arith.cmpi eq, %arg0, %c1_i32 : i32
    %4 = arith.extui %3 : i1 to i32
    %c0_i32_1 = arith.constant 0 : i32
    %5 = arith.cmpi ne, %4, %c0_i32_1 : i32
    scf.if %5 {
      %c0 = arith.constant 0 : index
      %c0_2 = arith.constant 0 : index
      %c0_3 = arith.constant 0 : index
      %6 = vector.load %arg3[%c0, %c0_2, %c0_3] : memref<2x8x256xf32, #tpu.memory_space<vmem>>, vector<2x8x256xf32>
      %c0_4 = arith.constant 0 : index
      %c0_5 = arith.constant 0 : index
      %7 = vector.load %arg9[%c0_4, %c0_5] : memref<8x1xf32, #tpu.memory_space<vmem>>, vector<8x1xf32>
      %8 = vector.shape_cast %7 : vector<8x1xf32> to vector<1x8x1xf32>
      %9 = vector.broadcast %8 : vector<1x8x1xf32> to vector<2x8x256xf32>
      %10 = arith.mulf %6, %9 : vector<2x8x256xf32>
      %c0_6 = arith.constant 0 : index
      %c0_7 = arith.constant 0 : index
      %11 = vector.load %arg10[%c0_6, %c0_7] : memref<8x1xf32, #tpu.memory_space<vmem>>, vector<8x1xf32>
      %12 = vector.shape_cast %11 : vector<8x1xf32> to vector<1x8x1xf32>
      %13 = vector.broadcast %12 : vector<1x8x1xf32> to vector<2x8x256xf32>
      %14 = arith.addf %10, %13 : vector<2x8x256xf32>
      %c0_8 = arith.constant 0 : index
      %c0_9 = arith.constant 0 : index
      %c0_10 = arith.constant 0 : index
      %15 = vector.load %arg6[%c0_8, %c0_9, %c0_10] : memref<2x8x256xf32, #tpu.memory_space<vmem>>, vector<2x8x256xf32>
      tpu.vector_store %arg6[%c0_8, %c0_9, %c0_10], %14 {strides = array<i32>} : memref<2x8x256xf32, #tpu.memory_space<vmem>>, vector<2x8x256xf32>,
    } else {
    }
    return
  }
  func.func @transform_0(%arg0: i32, %arg1: i32, %arg2: i32) -> (i32, i32, i32) {
    %c0_i32 = arith.constant 0 : i32
    %c0_i32_0 = arith.constant 0 : i32
    return %arg1, %c0_i32, %arg2 : i32, i32, i32
  }
  func.func @transform_1(%arg0: i32, %arg1: i32, %arg2: i32) -> (i32, i32) {
    %c0_i32 = arith.constant 0 : i32
    %c0_i32_0 = arith.constant 0 : i32
    %c0_i32_1 = arith.constant 0 : i32
    return %c0_i32, %c0_i32_0 : i32, i32
  }
  func.func @transform_2(%arg0: i32, %arg1: i32, %arg2: i32) -> (i32, i32) {
    %c0_i32 = arith.constant 0 : i32
    %c0_i32_0 = arith.constant 0 : i32
    %c0_i32_1 = arith.constant 0 : i32
    return %c0_i32, %c0_i32_0 : i32, i32
  }
  func.func @transform_3(%arg0: i32, %arg1: i32, %arg2: i32) -> (i32, i32, i32) {
    %0 = arith.muli %arg1, %arg0 : i32
    %1 = arith.muli %arg2, %arg0 : i32
    %c0_i32 = arith.constant 0 : i32
    %c0_i32_0 = arith.constant 0 : i32
    return %0, %c0_i32, %1 : i32, i32, i32
  }
}

</mosaic_0001>

<llo_original>
// kernel: tpu_custom_call.1
$region0: #{tpu_custom_call.1}
  #allocation0 [shape = 'u32[]', space=smem, size = 0x4, offset = 0x4, fixed_abs, tag = 'smem constant byte address 0x4 - core index']
  #allocation1 [shape = 'u32[144,128]{1,0:T(1,128)}', space=vmem, size = 0x12000, scoped, tag = 'internal scratch']
  #allocation2 [shape = 'f32[8,1]{1,0:T(8,128)}', space=vmem, size = 0x1000, scoped, tag = 'scratch operand']
  #allocation3 [shape = 'f32[8,1]{1,0:T(8,128)}', space=vmem, size = 0x1000, scoped, tag = 'scratch operand']
  #allocation4 [shape = 'f32[8,1]{1,0:T(8,128)}', space=vmem, size = 0x1000, scoped, tag = 'scratch operand']
  #allocation5 [shape = 'f32[8,1]{1,0:T(8,128)}', space=vmem, size = 0x1000, scoped, tag = 'scratch operand']
  %s0 = inlined_call_operand.hbm [shape: f32[2,8,256], index: 0, kind: input, shape index: {}]
  %s1 = inlined_call_operand.vmem [shape: f32[8,1], index: 1, kind: input, shape index: {}]
  %s2 = inlined_call_operand.vmem [shape: f32[8,1], index: 2, kind: input, shape index: {}]
  %s3 = inlined_call_operand.hbm [shape: f32[2,8,256], index: 3, kind: output, shape index: {}]
  %s4 = sld [smem:[#allocation0]]
  $region65: #{tpu_custom_call.1} parent=0
    _
  %s6 = ssub.s32 1, %s4
  %s7 = scalar_select 0, %s6, %s4
  $region1: #{tpu_custom_call.1} parent=0
    #allocation6 [shape = 'u8[16384]{0}', space=vmem, size = 0x4000, scoped, tag = 'input window, operand 0, single buffered']
    #allocation7 [shape = 's32[2]{0}', space=sflag, size = 0x8, scoped, tag = 'scoped memory for tpu_custom_call.1']
    #allocation8 [shape = 's32[2]{0}', space=sflag, size = 0x8, scoped, tag = 'scoped memory for tpu_custom_call.1']
    #allocation9 [shape = 'u8[32768]{0}', space=vmem, size = 0x8000, scoped, tag = 'output window, operand 0']
    %8 = vsyncpa [#allocation7], 0
    %9 = vsyncpa [#allocation8], 0
    %s10 = scalar_lea.sflag [#allocation8], 1
    %11 = vsyncpa %s10, 0
    loop: start=0, step=1, limit=4
    $region2: #{tpu_custom_call.1} parent=1 // loop_pre_header
      _
    $region3: #{tpu_custom_call.1} parent=1 // loop_header
      %s13 = sphi 0, %s17
      %p14 = scmp.ge.s32.totalorder %s13, 4
      %s20 = sphi 0, %s39
      %s21 = sphi 0, %s35
      %s22 = sphi 0, %s31
      %s23 = sphi 0, %s20
      %s24 = sphi 0, %s21
      %s25 = sphi 0, %s22
      %s26 = sphi 0, %s23
      %s27 = sphi 0, %s24
      %s28 = sphi 0, %s25
      %s44 = sphi 0, %s46
      %s47 = sphi 0, %s44
      %s48 = sphi 0, %s47
      %s64 = sphi 0, %s48
      %s68 = sphi 0, %s68
      %s70 = sphi 0, %s68
      %s71 = sphi 0, %s70
      %s85 = sphi 0, %s71
      %s89 = sphi 0, %s89
      %s91 = sphi 0, %s89
      %s92 = sphi 0, %s91
      %s106 = sphi 0, %s92
      %s118 = sphi 0, %s120
      %s121 = sphi 0, %s118
      %s122 = sphi 0, %s121
      %s138 = sphi 0, %s122
    $region4: #{tpu_custom_call.1} parent=1 // loop_header_branch
      %16 = sbr.rel (%p14) target = $region8
    $region5: #{tpu_custom_call.1} parent=1 // loop_body
      %s18 = ssub.s32 %s13, 1
      %s19 = ssub.s32 %s13, 2
      %s29 = sadd.s32 1, %s22
      %p30 = scmp.ge.s32.totalorder %s29, 1
      %s31 = scalar_select %p30, 0, %s29
      %s32 = sadd.s32 1, %s21
      %s33 = scalar_select %p30, %s32, %s21
      %p34 = scmp.ge.s32.totalorder %s33, 1
      %s35 = scalar_select %p34, 0, %s33
      %s36 = sadd.s32 1, %s20
      %s37 = scalar_select %p34, %s36, %s20
      %p38 = scmp.ge.s32.totalorder %s37, 2
      %s39 = scalar_select %p38, 0, %s37
      %s40 = ssub.s32 %s21, %s35
      %s41 = ssub.s32 %s22, %s31
      %s42 = sor.u32 %s40, %s41
      %p43 = scmp.eq.s32.totalorder %s42, 0
      %s45 = sadd.s32 %s44, 1
      %s46 = scalar_select %p43, %s44, %s45
      %p49 = pneg %p43
      %p50 = scmp.eq.s32.totalorder %s13, 1
      %p51 = por %p49, %p50
      %p52 = scmp.ne.s32.totalorder %s44, %s47
      %p53 = scmp.eq.s32.totalorder %s13, 0
      %p54 = por %p52, %p53
      %p55 = scmp.ne.s32.totalorder %s44, %s47
      %p56 = scmp.eq.s32.totalorder %s18, 1
      %p57 = por %p55, %p56
      %p58 = scmp.ne.s32.totalorder %s47, %s48
      %p59 = scmp.eq.s32.totalorder %s18, 0
      %p60 = por %p58, %p59
      %p61 = scmp.ne.s32.totalorder %s47, %s48
      %p62 = scmp.eq.s32.totalorder %s19, 1
      %p63 = por %p61, %p62
      %p65 = scmp.ne.s32.totalorder %s48, %s64
      %p66 = scmp.eq.s32.totalorder %s19, 0
      %p67 = por %p65, %p66
      %s69 = sadd.s32 %s68, 1
      %p72 = scmp.eq.s32.totalorder %s13, 1
      %p73 = scmp.ne.s32.totalorder %s68, %s70
      %p74 = scmp.eq.s32.totalorder %s13, 0
      %p75 = por %p73, %p74
      %p76 = scmp.ne.s32.totalorder %s68, %s70
      %p77 = scmp.eq.s32.totalorder %s18, 1
      %p78 = por %p76, %p77
      %p79 = scmp.ne.s32.totalorder %s70, %s71
      %p80 = scmp.eq.s32.totalorder %s18, 0
      %p81 = por %p79, %p80
      %p82 = scmp.ne.s32.totalorder %s70, %s71
      %p83 = scmp.eq.s32.totalorder %s19, 1
      %p84 = por %p82, %p83
      %p86 = scmp.ne.s32.totalorder %s71, %s85
      %p87 = scmp.eq.s32.totalorder %s19, 0
      %p88 = por %p86, %p87
      %s90 = sadd.s32 %s89, 1
      %p93 = scmp.eq.s32.totalorder %s13, 1
      %p94 = scmp.ne.s32.totalorder %s89, %s91
      %p95 = scmp.eq.s32.totalorder %s13, 0
      %p96 = por %p94, %p95
      %p97 = scmp.ne.s32.totalorder %s89, %s91
      %p98 = scmp.eq.s32.totalorder %s18, 1
      %p99 = por %p97, %p98
      %p100 = scmp.ne.s32.totalorder %s91, %s92
      %p101 = scmp.eq.s32.totalorder %s18, 0
      %p102 = por %p100, %p101
      %p103 = scmp.ne.s32.totalorder %s91, %s92
      %p104 = scmp.eq.s32.totalorder %s19, 1
      %p105 = por %p103, %p104
      %p107 = scmp.ne.s32.totalorder %s92, %s106
      %p108 = scmp.eq.s32.totalorder %s19, 0
      %p109 = por %p107, %p108
      %s110 = smul.u32 %s21, %s20
      %s111 = smul.u32 %s22, %s20
      %s112 = smul.u32 %s35, %s39
      %s113 = smul.u32 %s31, %s39
      %s114 = ssub.s32 %s110, %s112
      %s115 = ssub.s32 %s111, %s113
      %s116 = sor.u32 %s114, %s115
      %p117 = scmp.eq.s32.totalorder %s116, 0
      %s119 = sadd.s32 %s118, 1
      %s120 = scalar_select %p117, %s118, %s119
      %p123 = pneg %p117
      %p124 = scmp.eq.s32.totalorder %s13, 1
      %p125 = por %p123, %p124
      %p126 = scmp.ne.s32.totalorder %s118, %s121
      %p127 = scmp.eq.s32.totalorder %s13, 0
      %p128 = por %p126, %p127
      %p129 = scmp.ne.s32.totalorder %s118, %s121
      %p130 = scmp.eq.s32.totalorder %s18, 1
      %p131 = por %p129, %p130
      %p132 = scmp.ne.s32.totalorder %s121, %s122
      %p133 = scmp.eq.s32.totalorder %s18, 0
      %p134 = por %p132, %p133
      %p135 = scmp.ne.s32.totalorder %s121, %s122
      %p136 = scmp.eq.s32.totalorder %s19, 1
      %p137 = por %p135, %p136
      %p139 = scmp.ne.s32.totalorder %s122, %s138
      %p140 = scmp.eq.s32.totalorder %s19, 0
      %p141 = por %p139, %p140
      %p142 = scmp.le.s32.totalorder 1, %s13
      %p143 = scmp.lt.s32.totalorder %s13, 3
      %p144 = pnand %p142, %p143
      %p145 = pneg %p144
      // Predicated region
      $region9: #{tpu_custom_call.1} parent=5 // pred_check
        _
      $region10: #{tpu_custom_call.1} parent=5 // pred_check_branch
        %147 = sbr.rel (%p144) target = $region12
      $region11: #{tpu_custom_call.1} parent=5 // pred_region
        %s148 = ssub.s32 %s13, 1
        // Predicated region
        $region13: #{tpu_custom_call.1} parent=11 // pred_check
          %p149 = pneg %p60
        $region14: #{tpu_custom_call.1} parent=11 // pred_check_branch
          %151 = sbr.rel (%p149) target = $region16
        $region15: #{tpu_custom_call.1} parent=11 // pred_region
          %s152 = smul.u32 2, %s24
          %s153 = smul.u32 2, %s25
          %s155 = ssub.s32 512, 512
          %156 = vsyncadd [#allocation7], %s155
          %s157 = smul.addr %s152, 2
          %s158 = sadd.s32 %s153, %s157
          %s159 = smul.addr %s158, 128
          %s160 = scalar_lea.hbm %s0, %s159
          %s161 = sshll.u32 [#allocation6], 4
          %s162 = int_to_ptr.vmem [resolvable:$true] %s161
          %167 = dma.hbm_to_vmem [thread:$0]  %s160, 512, %s162, [#allocation7], 256, 256, 16
        $region16: #{tpu_custom_call.1} parent=11 // pred_fallthru
          _
        // Predicated region
        $region17: #{tpu_custom_call.1} parent=11 // pred_check
          %p168 = pneg %p81
        $region18: #{tpu_custom_call.1} parent=11 // pred_check_branch
          %170 = sbr.rel (%p168) target = $region20
        $region19: #{tpu_custom_call.1} parent=11 // pred_region
          _
        $region20: #{tpu_custom_call.1} parent=11 // pred_fallthru
          _
        // Predicated region
        $region21: #{tpu_custom_call.1} parent=11 // pred_check
          %p171 = pneg %p102
        $region22: #{tpu_custom_call.1} parent=11 // pred_check_branch
          %173 = sbr.rel (%p171) target = $region24
        $region23: #{tpu_custom_call.1} parent=11 // pred_region
          _
        $region24: #{tpu_custom_call.1} parent=11 // pred_fallthru
          _
      $region12: #{tpu_custom_call.1} parent=5 // pred_fallthru
        _
      %p174 = scmp.lt.s32.totalorder %s13, 2
      // Predicated region
      $region25: #{tpu_custom_call.1} parent=5 // pred_check
        %p175 = pneg %p174
      $region26: #{tpu_custom_call.1} parent=5 // pred_check_branch
        %177 = sbr.rel (%p175) target = $region28
      $region27: #{tpu_custom_call.1} parent=5 // pred_region
        _
      $region28: #{tpu_custom_call.1} parent=5 // pred_fallthru
        _
      %p178 = scmp.le.s32.totalorder 1, %s13
      %p179 = scmp.lt.s32.totalorder %s13, 3
      %p180 = pnand %p178, %p179
      %p181 = pneg %p180
      // Predicated region
      $region29: #{tpu_custom_call.1} parent=5 // pred_check
        _
      $region30: #{tpu_custom_call.1} parent=5 // pred_check_branch
        %183 = sbr.rel (%p180) target = $region32
      $region31: #{tpu_custom_call.1} parent=5 // pred_region
        %s184 = ssub.s32 %s13, 1
        // Predicated region
        $region33: #{tpu_custom_call.1} parent=31 // pred_check
          %p185 = pneg %p60
        $region34: #{tpu_custom_call.1} parent=31 // pred_check_branch
          %187 = sbr.rel (%p185) target = $region36
        $region35: #{tpu_custom_call.1} parent=31 // pred_region
          %188 = dma.done [#allocation7], 512
        $region36: #{tpu_custom_call.1} parent=31 // pred_fallthru
          _
        %p189 = pneg %p60
        %p190 = pneg %p57
        %p191 = pneg %p81
        %p192 = pneg %p78
        %p193 = pneg %p102
        %p194 = pneg %p99
        %p195 = pneg %p134
        %p196 = pneg %p131
        %s197 = sand.u32 %s121, 1
        %s198 = scalar_lea.sflag [#allocation8], %s197
        %s199 = sand.u32 %s121, 1
        %s200 = smul.addr %s199, 32
        %s201 = scalar_lea.vmem [#allocation9], %s200
        %s202 = smul.u32 2, %s24
        %s203 = smul.u32 2, %s25
        %s204 = smul.u32 %s24, %s23
        %s205 = smul.u32 %s25, %s23
        %s206 = smul.u32 2, %s204
        %s207 = smul.u32 2, %s205
        %p208 = scmp.eq.s32.totalorder %s23, 0
        // Predicated region
        $region37: #{tpu_custom_call.1} parent=31 // pred_check
          %p209 = pneg %p208
        $region38: #{tpu_custom_call.1} parent=31 // pred_check_branch
          %211 = sbr.rel (%p209) target = $region40
        $region39: #{tpu_custom_call.1} parent=31 // pred_region
          %p212 = scmp.eq.s32.totalorder %s24, 0
          %p213 = scmp.eq.s32.totalorder %s25, 0
          %p214 = pnand %p212, %p213
          %p215 = pneg %p214
          // Predicated region
          $region41: #{tpu_custom_call.1} parent=39 // pred_check
            _
          $region42: #{tpu_custom_call.1} parent=39 // pred_check_branch
            %217 = sbr.rel (%p214) target = $region44
          $region43: #{tpu_custom_call.1} parent=39 // pred_region
            %vm218 = vcmask 7168
            %219 = vst.msk [vmem:[#allocation2] sm:$0xff] %vm218, 0.0
            %220 = vst.msk [vmem:[#allocation3] sm:$0xff] %vm218, 0.0
          $region44: #{tpu_custom_call.1} parent=39 // pred_fallthru
            _
          %v221 = vld [vmem:[#allocation6] sm:$0xff]
          %v222 = vld [vmem:[#allocation6 + $0x8] sm:$0xff]
          %v223 = vld [vmem:[#allocation6 + $0x10] sm:$0xff]
          %v224 = vld [vmem:[#allocation6 + $0x18] sm:$0xff]
          %v225 = vadd.f32 %v221, %v223
          %v226 = vadd.f32 %v222, %v224
          %v227 = vmul.f32 %v221, %v221
          %v228 = vmul.f32 %v222, %v222
          %v229 = vmul.f32 %v223, %v223
          %v230 = vmul.f32 %v224, %v224
          %v231 = vadd.f32 %v227, %v229
          %v232 = vadd.f32 %v228, %v230
          %v233 = vld [vmem:[#allocation2] sm:$0xff]
          %v234 = vadd.f32 %v225, %v226
          %235 = vadd.xlane.f32.xlu0 %v234
          %v236 = vpop.xlane.xlu0 %235
          %v237 = vadd.f32 %v233, %v236
          %vm238 = vcmask 7168
          %239 = vst.msk [vmem:[#allocation2] sm:$0xff] %vm238, %v237
          %v240 = vld [vmem:[#allocation3] sm:$0xff]
          %v241 = vadd.f32 %v231, %v232
          %242 = vadd.xlane.f32.xlu0 %v241
          %v243 = vpop.xlane.xlu0 %242
          %v244 = vadd.f32 %v240, %v243
          %245 = vst.msk [vmem:[#allocation3] sm:$0xff] %vm238, %v244
          // Predicated region
          $region45: #{tpu_custom_call.1} parent=39 // pred_check
            _
          $region46: #{tpu_custom_call.1} parent=39 // pred_check_branch
            %247 = sbr.rel (%p214) target = $region48
          $region47: #{tpu_custom_call.1} parent=39 // pred_region
            %v248 = vld [vmem:[#allocation2] sm:$0xff]
            %v249 = vmul.f32 %v248, 0.001953125
            %v250 = vld [vmem:[#allocation3] sm:$0xff]
            %v251 = vmul.f32 %v250, 0.001953125
            %v252 = vmul.f32 %v249, %v249
            %v253 = vsub.f32 %v251, %v252
            %v254 = vadd.f32 %v253, 1e-05
            %v255 = vrsqrt.pop %v254
            %v256 = vld [vmem:[%s1] sm:$0xff]
            %v257 = vmul.f32 %v256, %v255
            %258 = vst.msk [vmem:[#allocation4] sm:$0xff] %vm238, %v257
            %v259 = vld [vmem:[%s2] sm:$0xff]
            %v260 = vmul.f32 %v249, %v257
            %v261 = vsub.f32 %v259, %v260
            %262 = vst.msk [vmem:[#allocation5] sm:$0xff] %vm238, %v261
          $region48: #{tpu_custom_call.1} parent=39 // pred_fallthru
            _
        $region40: #{tpu_custom_call.1} parent=31 // pred_fallthru
          _
        %p263 = scmp.eq.s32.totalorder %s23, 1
        // Predicated region
        $region49: #{tpu_custom_call.1} parent=31 // pred_check
          %p264 = pneg %p263
        $region50: #{tpu_custom_call.1} parent=31 // pred_check_branch
          %266 = sbr.rel (%p264) target = $region52
        $region51: #{tpu_custom_call.1} parent=31 // pred_region
          %v267 = vld [vmem:[#allocation6] sm:$0xff]
          %v268 = vld [vmem:[#allocation6 + $0x8] sm:$0xff]
          %v269 = vld [vmem:[#allocation6 + $0x10] sm:$0xff]
          %v270 = vld [vmem:[#allocation6 + $0x18] sm:$0xff]
          %v271 = vld [vmem:[#allocation4] sm:$0xff]
          %273 = vset.pattern.permute.xlu0 0
          %274 = vperm.xlu0 %273, %v271
          %v275 = vpop.permute.xlu0 %274
          %v277 = vmul.f32 %v267, %v275
          %v278 = vmul.f32 %v268, %v275
          %v279 = vmul.f32 %v269, %v275
          %v280 = vmul.f32 %v270, %v275
          %v281 = vld [vmem:[#allocation5] sm:$0xff]
          %283 = vset.pattern.permute.xlu0 0
          %284 = vperm.xlu0 %283, %v281
          %v285 = vpop.permute.xlu0 %284
          %v287 = vadd.f32 %v277, %v285
          %v288 = vadd.f32 %v278, %v285
          %v289 = vadd.f32 %v279, %v285
          %v290 = vadd.f32 %v280, %v285
          %291 = vst [vmem:[%s201] sm:$0xff] %v287
          %292 = vst [vmem:[%s201 + $0x8] sm:$0xff] %v288
          %293 = vst [vmem:[%s201 + $0x10] sm:$0xff] %v289
          %294 = vst [vmem:[%s201 + $0x18] sm:$0xff] %v290
        $region52: #{tpu_custom_call.1} parent=31 // pred_fallthru
          _
        %s295 = sand.u32 %s121, 1
        %s296 = scalar_lea.sflag [#allocation8], %s295
        %s297 = sand.u32 %s121, 1
        %s298 = smul.addr %s297, 32
        %s299 = scalar_lea.vmem [#allocation9], %s298
        // Predicated region
        $region53: #{tpu_custom_call.1} parent=31 // pred_check
          %p300 = pneg %p131
        $region54: #{tpu_custom_call.1} parent=31 // pred_check_branch
          %302 = sbr.rel (%p300) target = $region56
        $region55: #{tpu_custom_call.1} parent=31 // pred_region
          %s303 = smul.u32 %s24, %s23
          %s304 = smul.u32 %s25, %s23
          %s305 = smul.u32 2, %s303
          %s306 = smul.u32 2, %s304
          %s308 = ssub.s32 512, 512
          %309 = vsyncadd %s296, %s308
          %s310 = smul.addr %s305, 2
          %s311 = sadd.s32 %s306, %s310
          %s312 = smul.addr %s311, 128
          %s313 = scalar_lea.hbm %s3, %s312
          %s314 = sshll.u32 %s299, 4
          %s315 = int_to_ptr.vmem [resolvable:$true] %s314
          %320 = dma.vmem_to_hbm [thread:$0]  %s315, 512, %s313, %s296, 256, 256, 16
        $region56: #{tpu_custom_call.1} parent=31 // pred_fallthru
          _
      $region32: #{tpu_custom_call.1} parent=5 // pred_fallthru
        _
      %p321 = scmp.le.s32.totalorder 2, %s13
      // Predicated region
      $region57: #{tpu_custom_call.1} parent=5 // pred_check
        %p322 = pneg %p321
      $region58: #{tpu_custom_call.1} parent=5 // pred_check_branch
        %324 = sbr.rel (%p322) target = $region60
      $region59: #{tpu_custom_call.1} parent=5 // pred_region
        %s325 = ssub.s32 %s13, 2
        // Predicated region
        $region61: #{tpu_custom_call.1} parent=59 // pred_check
          %p326 = pneg %p137
        $region62: #{tpu_custom_call.1} parent=59 // pred_check_branch
          %328 = sbr.rel (%p326) target = $region64
        $region63: #{tpu_custom_call.1} parent=59 // pred_region
          %s329 = sand.u32 %s122, 1
          %s330 = scalar_lea.sflag [#allocation8], %s329
          %s331 = sand.u32 %s122, 1
          %s332 = smul.addr %s331, 32
          %s333 = scalar_lea.vmem [#allocation9], %s332
          %334 = dma.done %s330, 512
        $region64: #{tpu_custom_call.1} parent=59 // pred_fallthru
          _
      $region60: #{tpu_custom_call.1} parent=5 // pred_fallthru
        _
    $region6: #{tpu_custom_call.1} parent=1 // loop_footer
      %s17 = sadd.s32 1, %s13
    $region7: #{tpu_custom_call.1} parent=1 // loop_footer_branch
      %12 = sbr.rel target = $region3
    $region8: #{tpu_custom_call.1} parent=1 // loop_exit
      _
    %335 = vsyncpa [#allocation7], 1
    %s336 = scalar_lea.sflag [#allocation7], 1
    %337 = vsyncpa %s336, 1
    %338 = vsyncpa [#allocation8], 1
    %s339 = scalar_lea.sflag [#allocation8], 1
    %340 = vsyncpa %s339, 1

</llo_original>
